<compile_context>
chip_gen: v6e
topology: v6e:2x2x1
jax: 0.10.0
libtpu: 0.0.40
codegen_flags: <defaults>
</compile_context>

<pallas_src>
import jax
import jax.numpy as jnp
from jax.experimental import pallas as pl
from jax.experimental.pallas import tpu as pltpu

_ROWS = 3            # a = x.view(3, 80)
_COLS = 80
_V = _ROWS * _COLS   # 240 values after the permute/flatten
_COPIES = 4          # duplication from cat(dim=0) followed by cat(dim=-1)


def _fused_kernel(a_ref, o_ref):
    # a_ref: (3, 80)  f32 -- the x.view(3, 80) data, whole block in VMEM.
    # o_ref: (4, 240) f32 -- row-major flatten is the final (960,) output.

    # --- 1) All elementwise math commuted in front of the permutation. ---
    # permute/tanh/t/tanh collapse to tanh(tanh(a)); relu and the final two
    # tanhs are elementwise, so they commute with the (bijective) permutation
    # and the 4x tiling.  All 5 EUP/VPU passes hit one (8,128)-resident block
    # and co-issue with the VPU mask construction below.
    g = jnp.tanh(jnp.tanh(a_ref[...]))
    g = jnp.maximum(g, 0.0)
    g = jnp.tanh(jnp.tanh(g))                                     # (3, 80)

    # --- 2) One selection matmul: pi[i, l] = g[i, l // 3]. ---
    # S[j, l] = (l // 3 == j), built band-style (two compares, no vector
    # integer division); only one (80,240) i32 temp is live at a time.
    jj = jax.lax.broadcasted_iota(jnp.int32, (_COLS, _V), 0)      # j in [0, 80)
    ll = jax.lax.broadcasted_iota(jnp.int32, (_COLS, _V), 1)      # l in [0, 240)
    d = ll - _ROWS * jj
    s_mat = jnp.where((d >= 0) & (d < _ROWS), 1.0, 0.0)           # (80, 240) f32, 0/1
    pi = jnp.dot(g, s_mat,
                 preferred_element_type=jnp.float32,
                 precision=jax.lax.Precision.HIGHEST)             # (3, 240), exact

    # --- 3) Row selection: v[l] = pi[l % 3, l] = g[l % 3, l // 3]. ---
    # rowmask[i, l] = (l % 3 == i).  l % 3 is derived from an exact f32
    # floor-divide (f32(1/3) > 1/3, so floor is exact for l < 240) to avoid
    # vector integer div/rem.  The 3-row sum goes to the otherwise-idle XLU.
    ri = jax.lax.broadcasted_iota(jnp.int32, (_ROWS, _V), 0)      # i in [0, 3)
    li = jax.lax.broadcasted_iota(jnp.int32, (_ROWS, _V), 1)      # l in [0, 240)
    l_div3 = jnp.floor(li.astype(jnp.float32) * (1.0 / _ROWS)).astype(jnp.int32)
    rowmask = jnp.where((li - _ROWS * l_div3) == ri, 1.0, 0.0)    # (3, 240) f32, 0/1
    v = jnp.sum(pi * rowmask, axis=0, keepdims=True)              # (1, 240)

    # --- 4) 4x tiling (cat dim=0 then cat dim=-1): row-duplicated store. ---
    o_ref[...] = jnp.broadcast_to(v, (_COPIES, _V))               # lane-0-aligned store


_fused_call = pl.pallas_call(
    _fused_kernel,
    out_shape=jax.ShapeDtypeStruct((_COPIES, _V), jnp.float32),
    in_specs=[pl.BlockSpec(memory_space=pltpu.MemorySpace.VMEM)],
    out_specs=pl.BlockSpec(memory_space=pltpu.MemorySpace.VMEM),
    cost_estimate=pl.CostEstimate(
        flops=2 * _ROWS * _COLS * _V + 10 * _ROWS * _COLS,  # 1 selection matmul + elementwise
        transcendentals=4 * _ROWS * _COLS,                  # 4 tanh passes over 240 values
        bytes_accessed=(_ROWS * _COLS + _COPIES * _V) * 4,
    ),
)


@jax.jit
def model_forward(x):
    # torch: x.view(3, 80)  (outside-kernel reshape is a free relayout in XLA)
    a = x.reshape(_ROWS, _COLS)
    out = _fused_call(a)                 # single fused Pallas kernel -> (4, 240)
    return out.reshape(-1)               # (960,)


if __name__ == "__main__":
    key = jax.random.PRNGKey(0)
    # TODO(synk): the original fuzz program feeds x of shape (2, 3, 10) (60 elems)
    # into x.view(3, 80); we keep the minimal fix of a 240-element input (2, 3, 40).
    x = jax.random.normal(key, (2, 3, 40), dtype=jnp.float32)

    out = model_forward(x)
    jax.block_until_ready(out)

    # Pure-JAX reference of the same (shape-fixed) graph.
    a = x.reshape(3, 80)
    y_ref = jnp.tanh(jnp.tanh(a))
    y_ref = jnp.transpose(y_ref).reshape(3, 80)                    # permute(1,0) + view(3,80)
    z_ref = jnp.concatenate([y_ref, y_ref], axis=0).reshape(2, -1)  # cat dim=0 + reshape(2,-1)
    z_ref = jnp.maximum(z_ref, 0.0)                                 # relu (shape[0]!=2 -> else branch)
    ref = jnp.tanh(jnp.tanh(jnp.concatenate([z_ref, z_ref], axis=-1))).reshape(-1)

    assert out.shape == (960,) and out.dtype == jnp.float32
    assert jnp.allclose(out, ref, atol=1e-5, rtol=1e-5), float(jnp.max(jnp.abs(out - ref)))

    print("KERNEL_OK")
</pallas_src>

<mosaic_0001>
module attributes {stable_mosaic.version = 11 : i64} {
  func.func @_fused_kernel(%arg0: memref<3x80xf32, #tpu.memory_space<vmem>>, %arg1: memref<4x240xf32, #tpu.memory_space<vmem>>) attributes {dimension_semantics = [], scalar_prefetch = 0 : i64, scratch_operands = 0 : i64, tpu.core_type = #tpu.core_type<tc>} {
    %c0 = arith.constant 0 : index
    %c0_0 = arith.constant 0 : index
    %0 = vector.load %arg0[%c0, %c0_0] : memref<3x80xf32, #tpu.memory_space<vmem>>, vector<3x80xf32>
    %1 = math.tanh %0 : vector<3x80xf32>
    %2 = math.tanh %1 : vector<3x80xf32>
    %cst = arith.constant 0.000000e+00 : f32
    %3 = vector.broadcast %cst : f32 to vector<3x80xf32>
    %4 = arith.maximumf %2, %3 : vector<3x80xf32>
    %5 = math.tanh %4 : vector<3x80xf32>
    %6 = math.tanh %5 : vector<3x80xf32>
    %7 = tpu.iota {dimensions = array<i32: 0>} : vector<80x240xi32>
    %8 = tpu.iota {dimensions = array<i32: 1>} : vector<80x240xi32>
    %c3_i32 = arith.constant 3 : i32
    %9 = vector.broadcast %c3_i32 : i32 to vector<80x240xi32>
    %10 = arith.muli %9, %7 : vector<80x240xi32>
    %11 = arith.subi %8, %10 : vector<80x240xi32>
    %c0_i32 = arith.constant 0 : i32
    %12 = vector.broadcast %c0_i32 : i32 to vector<80x240xi32>
    %13 = arith.cmpi sge, %11, %12 : vector<80x240xi32>
    %c3_i32_1 = arith.constant 3 : i32
    %14 = vector.broadcast %c3_i32_1 : i32 to vector<80x240xi32>
    %15 = arith.cmpi slt, %11, %14 : vector<80x240xi32>
    %16 = arith.andi %13, %15 : vector<80x240xi1>
    %cst_2 = arith.constant 1.000000e+00 : f32
    %cst_3 = arith.constant 0.000000e+00 : f32
    %17 = vector.broadcast %cst_2 : f32 to vector<80x240xf32>
    %18 = vector.broadcast %cst_3 : f32 to vector<80x240xf32>
    %19 = arith.select %16, %17, %18 : vector<80x240xi1>, vector<80x240xf32>
    %cst_4 = arith.constant dense<0.000000e+00> : vector<3x240xf32>
    %20 = tpu.matmul %6, %19, %cst_4 {dimension_numbers = #tpu.dot_dimension_numbers<[1], [0], [0], [1], [0, 0, 1, 1], [], []>, precision = #tpu.contract_precision<fp32>} : vector<3x80xf32>, vector<80x240xf32>, vector<3x240xf32> -> vector<3x240xf32>
    %21 = tpu.iota {dimensions = array<i32: 0>} : vector<3x240xi32>
    %22 = tpu.iota {dimensions = array<i32: 1>} : vector<3x240xi32>
    %23 = arith.sitofp %22 : vector<3x240xi32> to vector<3x240xf32>
    %cst_5 = arith.constant 0.333333343 : f32
    %24 = vector.broadcast %cst_5 : f32 to vector<3x240xf32>
    %25 = arith.mulf %23, %24 : vector<3x240xf32>
    %26 = math.floor %25 : vector<3x240xf32>
    %27 = arith.fptosi %26 : vector<3x240xf32> to vector<3x240xi32>
    %c3_i32_6 = arith.constant 3 : i32
    %28 = vector.broadcast %c3_i32_6 : i32 to vector<3x240xi32>
    %29 = arith.muli %28, %27 : vector<3x240xi32>
    %30 = arith.subi %22, %29 : vector<3x240xi32>
    %31 = arith.cmpi eq, %30, %21 : vector<3x240xi32>
    %cst_7 = arith.constant 1.000000e+00 : f32
    %cst_8 = arith.constant 0.000000e+00 : f32
    %32 = vector.broadcast %cst_7 : f32 to vector<3x240xf32>
    %33 = vector.broadcast %cst_8 : f32 to vector<3x240xf32>
    %34 = arith.select %31, %32, %33 : vector<3x240xi1>, vector<3x240xf32>
    %35 = arith.mulf %20, %34 : vector<3x240xf32>
    %cst_9 = arith.constant dense<0.000000e+00> : vector<240xf32>
    %36 = vector.multi_reduction <add>, %35, %cst_9 [0] : vector<3x240xf32> to vector<240xf32>
    %37 = vector.shape_cast %36 : vector<240xf32> to vector<1x240xf32>
    %38 = vector.shape_cast %37 : vector<1x240xf32> to vector<1x240xf32>
    %39 = vector.broadcast %38 : vector<1x240xf32> to vector<4x240xf32>
    %c0_10 = arith.constant 0 : index
    %c0_11 = arith.constant 0 : index
    %40 = vector.load %arg1[%c0_10, %c0_11] : memref<4x240xf32, #tpu.memory_space<vmem>>, vector<4x240xf32>
    tpu.vector_store %arg1[%c0_10, %c0_11], %39 {strides = array<i32>} : memref<4x240xf32, #tpu.memory_space<vmem>>, vector<4x240xf32>,
    return
  }
}

</mosaic_0001>

<llo_original>
// kernel: model_forward.1
$region0: #{model_forward.1}
  #allocation0 [shape = 'u32[]', space=smem, size = 0x4, offset = 0x4, fixed_abs, tag = 'smem constant byte address 0x4 - core index']
  #allocation1 [shape = 'u32[144,128]{1,0:T(1,128)}', space=vmem, size = 0x12000, scoped, tag = 'internal scratch']
  %s0 = inlined_call_operand.vmem [shape: f32[3,80], index: 0, kind: input, shape index: {}]
  %s1 = inlined_call_operand.vmem [shape: f32[4,240], index: 1, kind: output, shape index: {}]
  %s2 = sld [smem:[#allocation0]]
  $region14: #{model_forward.1} parent=0
    _
  %s4 = ssub.s32 1, %s2
  %s5 = scalar_select 0, %s4, %s2
  // Predicated region
  $region2: #{model_forward.1} parent=0 // pred_check
    _
  $region3: #{model_forward.1} parent=0 // pred_check_branch
    %7 = sbr.rel (0) target = $region5
  $region4: #{model_forward.1} parent=0 // pred_region
    _
  $region5: #{model_forward.1} parent=0 // pred_fallthru
    _
  %v8 = vld [vmem:[%s0] sm:$0x7]
  %v9 = vtanh.pop %v8
  %v10 = vtanh.pop %v9
  %v11 = vmax.f32 %v10, 0.0
  %v12 = vtanh.pop %v11
  %v13 = vtanh.pop %v12
  %v14 = vlaneseq
  %v15 = vshrl.u32 %v14, 7
  %v16 = vadd.s32 %v15, 8
  %v17 = vadd.s32 %v15, 16
  %v18 = vadd.s32 %v15, 24
  %v19 = vadd.s32 %v15, 32
  %v20 = vadd.s32 %v15, 40
  %v21 = vadd.s32 %v15, 48
  %v22 = vadd.s32 %v15, 56
  %v23 = vadd.s32 %v15, 64
  %v24 = vadd.s32 %v15, 72
  %v25 = vlaneseq
  %v26 = vand.u32 %v25, 127
  %v27 = vadd.s32 %v26, 128
  %v28 = vmul.u32 %v15, 3
  %v29 = vmul.u32 %v16, 3
  %v30 = vmul.u32 %v17, 3
  %v31 = vmul.u32 %v18, 3
  %v32 = vmul.u32 %v19, 3
  %v33 = vmul.u32 %v20, 3
  %v34 = vmul.u32 %v21, 3
  %v35 = vmul.u32 %v22, 3
  %v36 = vmul.u32 %v23, 3
  %v37 = vmul.u32 %v24, 3
  %v38 = vsub.s32 %v26, %v28
  %v39 = vsub.s32 %v27, %v28
  %v40 = vsub.s32 %v26, %v29
  %v41 = vsub.s32 %v27, %v29
  %v42 = vsub.s32 %v26, %v30
  %v43 = vsub.s32 %v27, %v30
  %v44 = vsub.s32 %v26, %v31
  %v45 = vsub.s32 %v27, %v31
  %v46 = vsub.s32 %v26, %v32
  %v47 = vsub.s32 %v27, %v32
  %v48 = vsub.s32 %v26, %v33
  %v49 = vsub.s32 %v27, %v33
  %v50 = vsub.s32 %v26, %v34
  %v51 = vsub.s32 %v27, %v34
  %v52 = vsub.s32 %v26, %v35
  %v53 = vsub.s32 %v27, %v35
  %v54 = vsub.s32 %v26, %v36
  %v55 = vsub.s32 %v27, %v36
  %v56 = vsub.s32 %v26, %v37
  %v57 = vsub.s32 %v27, %v37
  %vm58 = vcmp.ge.s32.totalorder %v38, 0
  %vm59 = vcmp.ge.s32.totalorder %v39, 0
  %vm60 = vcmp.ge.s32.totalorder %v40, 0
  %vm61 = vcmp.ge.s32.totalorder %v41, 0
  %vm62 = vcmp.ge.s32.totalorder %v42, 0
  %vm63 = vcmp.ge.s32.totalorder %v43, 0
  %vm64 = vcmp.ge.s32.totalorder %v44, 0
  %vm65 = vcmp.ge.s32.totalorder %v45, 0
  %vm66 = vcmp.ge.s32.totalorder %v46, 0
  %vm67 = vcmp.ge.s32.totalorder %v47, 0
  %vm68 = vcmp.ge.s32.totalorder %v48, 0
  %vm69 = vcmp.ge.s32.totalorder %v49, 0
  %vm70 = vcmp.ge.s32.totalorder %v50, 0
  %vm71 = vcmp.ge.s32.totalorder %v51, 0
  %vm72 = vcmp.ge.s32.totalorder %v52, 0
  %vm73 = vcmp.ge.s32.totalorder %v53, 0
  %vm74 = vcmp.ge.s32.totalorder %v54, 0
  %vm75 = vcmp.ge.s32.totalorder %v55, 0
  %vm76 = vcmp.ge.s32.totalorder %v56, 0
  %vm77 = vcmp.ge.s32.totalorder %v57, 0
  %vm78 = vcmp.lt.s32.totalorder %v38, 3
  %vm79 = vcmp.lt.s32.totalorder %v39, 3
  %vm80 = vcmp.lt.s32.totalorder %v40, 3
  %vm81 = vcmp.lt.s32.totalorder %v41, 3
  %vm82 = vcmp.lt.s32.totalorder %v42, 3
  %vm83 = vcmp.lt.s32.totalorder %v43, 3
  %vm84 = vcmp.lt.s32.totalorder %v44, 3
  %vm85 = vcmp.lt.s32.totalorder %v45, 3
  %vm86 = vcmp.lt.s32.totalorder %v46, 3
  %vm87 = vcmp.lt.s32.totalorder %v47, 3
  %vm88 = vcmp.lt.s32.totalorder %v48, 3
  %vm89 = vcmp.lt.s32.totalorder %v49, 3
  %vm90 = vcmp.lt.s32.totalorder %v50, 3
  %vm91 = vcmp.lt.s32.totalorder %v51, 3
  %vm92 = vcmp.lt.s32.totalorder %v52, 3
  %vm93 = vcmp.lt.s32.totalorder %v53, 3
  %vm94 = vcmp.lt.s32.totalorder %v54, 3
  %vm95 = vcmp.lt.s32.totalorder %v55, 3
  %vm96 = vcmp.lt.s32.totalorder %v56, 3
  %vm97 = vcmp.lt.s32.totalorder %v57, 3
  %vm98 = vmand %vm58, %vm78
  %vm99 = vmand %vm59, %vm79
  %vm100 = vmand %vm60, %vm80
  %vm101 = vmand %vm61, %vm81
  %vm102 = vmand %vm62, %vm82
  %vm103 = vmand %vm63, %vm83
  %vm104 = vmand %vm64, %vm84
  %vm105 = vmand %vm65, %vm85
  %vm106 = vmand %vm66, %vm86
  %vm107 = vmand %vm67, %vm87
  %vm108 = vmand %vm68, %vm88
  %vm109 = vmand %vm69, %vm89
  %vm110 = vmand %vm70, %vm90
  %vm111 = vmand %vm71, %vm91
  %vm112 = vmand %vm72, %vm92
  %vm113 = vmand %vm73, %vm93
  %vm114 = vmand %vm74, %vm94
  %vm115 = vmand %vm75, %vm95
  %vm116 = vmand %vm76, %vm96
  %vm117 = vmand %vm77, %vm97
  %v118 = vsel %vm98, 1.0, 0.0
  %v119 = vsel %vm99, 1.0, 0.0
  %v120 = vsel %vm100, 1.0, 0.0
  %v121 = vsel %vm101, 1.0, 0.0
  %v122 = vsel %vm102, 1.0, 0.0
  %v123 = vsel %vm103, 1.0, 0.0
  %v124 = vsel %vm104, 1.0, 0.0
  %v125 = vsel %vm105, 1.0, 0.0
  %v126 = vsel %vm106, 1.0, 0.0
  %v127 = vsel %vm107, 1.0, 0.0
  %v128 = vsel %vm108, 1.0, 0.0
  %v129 = vsel %vm109, 1.0, 0.0
  %v130 = vsel %vm110, 1.0, 0.0
  %v131 = vsel %vm111, 1.0, 0.0
  %v132 = vsel %vm112, 1.0, 0.0
  %v133 = vsel %vm113, 1.0, 0.0
  %v134 = vsel %vm114, 1.0, 0.0
  %v135 = vsel %vm115, 1.0, 0.0
  %v136 = vsel %vm116, 1.0, 0.0
  %v137 = vsel %vm117, 1.0, 0.0
  %vm138 = vcmask 654336
  %v140 = vsel %vm138, %v13, 0
  %142 = vmatprep.subr.mxu0 0.0
  %143 = vmatpush1.msra.mxu0 0.0
  %144 = vmatprep.subr.mxu0 0.0
  %145 = vmatpush1.msra.mxu0 0.0
  %146 = vmatprep.subr.mxu0 0.0
  %147 = vmatpush1.msra.mxu0 0.0
  %148 = vmatprep.subr.mxu0 0.0
  %149 = vmatpush1.msra.mxu0 0.0
  %150 = vmatprep.subr.mxu0 0.0
  %151 = vmatpush1.msra.mxu0 0.0
  %152 = vmatprep.subr.mxu0 0.0
  %153 = vmatpush1.msra.mxu0 0.0
  %154 = vmatprep.subr.mxu0 %v137
  %155 = vmatpush1.msra.mxu0 %v136
  %156 = vmatprep.subr.mxu0 %v135
  %157 = vmatpush1.msra.mxu0 %v134
  %158 = vmatprep.subr.mxu0 %v133
  %159 = vmatpush1.msra.mxu0 %v132
  %160 = vmatprep.subr.mxu0 %v131
  %161 = vmatpush1.msra.mxu0 %v130
  %162 = vmatprep.subr.mxu0 %v129
  %163 = vmatpush1.msra.mxu0 %v128
  %164 = vmatprep.subr.mxu0 %v127
  %165 = vmatpush1.msra.mxu0 %v126
  %166 = vmatprep.subr.mxu0 %v125
  %167 = vmatpush1.msra.mxu0 %v124
  %168 = vmatprep.subr.mxu0 %v123
  %169 = vmatpush1.msra.mxu0 %v122
  %170 = vmatprep.subr.mxu0 %v121
  %171 = vmatpush1.msra.mxu0 %v120
  %172 = vmatprep.subr.mxu0 %v119
  %173 = vmatpush1.msra.mxu0 %v118
  %174 = vmatprep.subr.mxu0 0.0
  %175 = vmatpush2.msra.mxu0 0.0
  %176 = vmatprep.subr.mxu0 0.0
  %177 = vmatpush2.msra.mxu0 0.0
  %178 = vmatprep.subr.mxu0 0.0
  %179 = vmatpush2.msra.mxu0 0.0
  %180 = vmatprep.subr.mxu0 0.0
  %181 = vmatpush2.msra.mxu0 0.0
  %182 = vmatprep.subr.mxu0 0.0
  %183 = vmatpush2.msra.mxu0 0.0
  %184 = vmatprep.subr.mxu0 0.0
  %185 = vmatpush2.msra.mxu0 0.0
  %186 = vmatprep.subr.mxu0 0.0
  %187 = vmatpush2.msra.mxu0 0.0
  %188 = vmatprep.subr.mxu0 0.0
  %189 = vmatpush2.msra.mxu0 0.0
  %190 = vmatprep.subr.mxu0 0.0
  %191 = vmatpush2.msra.mxu0 0.0
  %192 = vmatprep.subr.mxu0 0.0
  %193 = vmatpush2.msra.mxu0 0.0
  %194 = vmatprep.subr.mxu0 0.0
  %195 = vmatpush2.msra.mxu0 0.0
  %196 = vmatprep.subr.mxu0 0.0
  %197 = vmatpush2.msra.mxu0 0.0
  %198 = vmatprep.subr.mxu0 0.0
  %199 = vmatpush2.msra.mxu0 0.0
  %200 = vmatprep.subr.mxu0 0.0
  %201 = vmatpush2.msra.mxu0 0.0
  %202 = vmatprep.subr.mxu0 0.0
  %203 = vmatpush2.msra.mxu0 0.0
  %204 = vmatprep.subr.mxu0 0.0
  %205 = vmatpush2.msra.mxu0 0.0
  %206 = vmatprep.mubr.f32.mxu0 0.0
  %v207 = vand.u32 %v140, 4294901760
  %v208 = vsub.f32 %v140, %v207
  %v209 = vand.u32 %v208, 4294901760
  %v210 = vsub.f32 %v208, %v209
  %v211 = vand.u32 %v210, 4294901760
  %212 = vmatmul.mubr.f32.gmra.mxu0 %v211
  %v213 = vpop.f32.mrf.mxu0
  %v214 = vadd.f32 0.0, %v213
  %v215 = vpop.f32.mrf.mxu0
  %v216 = vadd.f32 0.0, %v215
  %217 = vdwg.mxu0
  %218 = vmatprep.subr.mxu0 0.0
  %219 = vmatpush1.msra.mxu0 0.0
  %220 = vmatprep.subr.mxu0 0.0
  %221 = vmatpush1.msra.mxu0 0.0
  %222 = vmatprep.subr.mxu0 0.0
  %223 = vmatpush1.msra.mxu0 0.0
  %224 = vmatprep.subr.mxu0 0.0
  %225 = vmatpush1.msra.mxu0 0.0
  %226 = vmatprep.subr.mxu0 0.0
  %227 = vmatpush1.msra.mxu0 0.0
  %228 = vmatprep.subr.mxu0 0.0
  %229 = vmatpush1.msra.mxu0 0.0
  %v230 = vsub.f32 %v137, %v137
  %v231 = vand.u32 %v230, 4294901760
  %v232 = vsub.f32 %v230, %v231
  %v233 = vand.u32 %v232, 4294901760
  %234 = vmatprep.subr.mxu0 %v233
  %v235 = vsub.f32 %v136, %v136
  %v236 = vand.u32 %v235, 4294901760
  %v237 = vsub.f32 %v235, %v236
  %v238 = vand.u32 %v237, 4294901760
  %239 = vmatpush1.msra.mxu0 %v238
  %v240 = vsub.f32 %v135, %v135
  %v241 = vand.u32 %v240, 4294901760
  %v242 = vsub.f32 %v240, %v241
  %v243 = vand.u32 %v242, 4294901760
  %244 = vmatprep.subr.mxu0 %v243
  %v245 = vsub.f32 %v134, %v134
  %v246 = vand.u32 %v245, 4294901760
  %v247 = vsub.f32 %v245, %v246
  %v248 = vand.u32 %v247, 4294901760
  %249 = vmatpush1.msra.mxu0 %v248
  %v250 = vsub.f32 %v133, %v133
  %v251 = vand.u32 %v250, 4294901760
  %v252 = vsub.f32 %v250, %v251
  %v253 = vand.u32 %v252, 4294901760
  %254 = vmatprep.subr.mxu0 %v253
  %v255 = vsub.f32 %v132, %v132
  %v256 = vand.u32 %v255, 4294901760
  %v257 = vsub.f32 %v255, %v256
  %v258 = vand.u32 %v257, 4294901760
  %259 = vmatpush1.msra.mxu0 %v258
  %v260 = vsub.f32 %v131, %v131
  %v261 = vand.u32 %v260, 4294901760
  %v262 = vsub.f32 %v260, %v261
  %v263 = vand.u32 %v262, 4294901760
  %264 = vmatprep.subr.mxu0 %v263
  %v265 = vsub.f32 %v130, %v130
  %v266 = vand.u32 %v265, 4294901760
  %v267 = vsub.f32 %v265, %v266
  %v268 = vand.u32 %v267, 4294901760
  %269 = vmatpush1.msra.mxu0 %v268
  %v270 = vsub.f32 %v129, %v129
  %v271 = vand.u32 %v270, 4294901760
  %v272 = vsub.f32 %v270, %v271
  %v273 = vand.u32 %v272, 4294901760
  %274 = vmatprep.subr.mxu0 %v273
  %v275 = vsub.f32 %v128, %v128
  %v276 = vand.u32 %v275, 4294901760
  %v277 = vsub.f32 %v275, %v276
  %v278 = vand.u32 %v277, 4294901760
  %279 = vmatpush1.msra.mxu0 %v278
  %v280 = vsub.f32 %v127, %v127
  %v281 = vand.u32 %v280, 4294901760
  %v282 = vsub.f32 %v280, %v281
  %v283 = vand.u32 %v282, 4294901760
  %284 = vmatprep.subr.mxu0 %v283
  %v285 = vsub.f32 %v126, %v126
  %v286 = vand.u32 %v285, 4294901760
  %v287 = vsub.f32 %v285, %v286
  %v288 = vand.u32 %v287, 4294901760
  %289 = vmatpush1.msra.mxu0 %v288
  %v290 = vsub.f32 %v125, %v125
  %v291 = vand.u32 %v290, 4294901760
  %v292 = vsub.f32 %v290, %v291
  %v293 = vand.u32 %v292, 4294901760
  %294 = vmatprep.subr.mxu0 %v293
  %v295 = vsub.f32 %v124, %v124
  %v296 = vand.u32 %v295, 4294901760
  %v297 = vsub.f32 %v295, %v296
  %v298 = vand.u32 %v297, 4294901760
  %299 = vmatpush1.msra.mxu0 %v298
  %v300 = vsub.f32 %v123, %v123
  %v301 = vand.u32 %v300, 4294901760
  %v302 = vsub.f32 %v300, %v301
  %v303 = vand.u32 %v302, 4294901760
  %304 = vmatprep.subr.mxu0 %v303
  %v305 = vsub.f32 %v122, %v122
  %v306 = vand.u32 %v305, 4294901760
  %v307 = vsub.f32 %v305, %v306
  %v308 = vand.u32 %v307, 4294901760
  %309 = vmatpush1.msra.mxu0 %v308
  %v310 = vsub.f32 %v121, %v121
  %v311 = vand.u32 %v310, 4294901760
  %v312 = vsub.f32 %v310, %v311
  %v313 = vand.u32 %v312, 4294901760
  %314 = vmatprep.subr.mxu0 %v313
  %v315 = vsub.f32 %v120, %v120
  %v316 = vand.u32 %v315, 4294901760
  %v317 = vsub.f32 %v315, %v316
  %v318 = vand.u32 %v317, 4294901760
  %319 = vmatpush1.msra.mxu0 %v318
  %v320 = vsub.f32 %v119, %v119
  %v321 = vand.u32 %v320, 4294901760
  %v322 = vsub.f32 %v320, %v321
  %v323 = vand.u32 %v322, 4294901760
  %324 = vmatprep.subr.mxu0 %v323
  %v325 = vsub.f32 %v118, %v118
  %v326 = vand.u32 %v325, 4294901760
  %v327 = vsub.f32 %v325, %v326
  %v328 = vand.u32 %v327, 4294901760
  %329 = vmatpush1.msra.mxu0 %v328
  %330 = vmatprep.subr.mxu0 0.0
  %331 = vmatpush2.msra.mxu0 0.0
  %332 = vmatprep.subr.mxu0 0.0
  %333 = vmatpush2.msra.mxu0 0.0
  %334 = vmatprep.subr.mxu0 0.0
  %335 = vmatpush2.msra.mxu0 0.0
  %336 = vmatprep.subr.mxu0 0.0
  %337 = vmatpush2.msra.mxu0 0.0
  %338 = vmatprep.subr.mxu0 0.0
  %339 = vmatpush2.msra.mxu0 0.0
  %340 = vmatprep.subr.mxu0 0.0
  %341 = vmatpush2.msra.mxu0 0.0
  %342 = vmatprep.subr.mxu0 0.0
  %343 = vmatpush2.msra.mxu0 0.0
  %344 = vmatprep.subr.mxu0 0.0
  %345 = vmatpush2.msra.mxu0 0.0
  %346 = vmatprep.subr.mxu0 0.0
  %347 = vmatpush2.msra.mxu0 0.0
  %348 = vmatprep.subr.mxu0 0.0
  %349 = vmatpush2.msra.mxu0 0.0
  %350 = vmatprep.subr.mxu0 0.0
  %351 = vmatpush2.msra.mxu0 0.0
  %352 = vmatprep.subr.mxu0 0.0
  %353 = vmatpush2.msra.mxu0 0.0
  %354 = vmatprep.subr.mxu0 0.0
  %355 = vmatpush2.msra.mxu0 0.0
  %356 = vmatprep.subr.mxu0 0.0
  %357 = vmatpush2.msra.mxu0 0.0
  %358 = vmatprep.subr.mxu0 0.0
  %359 = vmatpush2.msra.mxu0 0.0
  %360 = vmatprep.subr.mxu0 0.0
  %361 = vmatpush2.msra.mxu0 0.0
  %362 = vmatprep.mubr.f32.mxu0 0.0
  %v363 = vand.u32 %v140, 4294901760
  %364 = vmatmul.mubr.f32.gmra.mxu0 %v363
  %v365 = vpop.f32.mrf.mxu0
  %v366 = vadd.f32 %v214, %v365
  %v367 = vpop.f32.mrf.mxu0
  %v368 = vadd.f32 %v216, %v367
  %369 = vdwg.mxu0
  %370 = vmatprep.subr.mxu0 0.0
  %371 = vmatpush1.msra.mxu0 0.0
  %372 = vmatprep.subr.mxu0 0.0
  %373 = vmatpush1.msra.mxu0 0.0
  %374 = vmatprep.subr.mxu0 0.0
  %375 = vmatpush1.msra.mxu0 0.0
  %376 = vmatprep.subr.mxu0 0.0
  %377 = vmatpush1.msra.mxu0 0.0
  %378 = vmatprep.subr.mxu0 0.0
  %379 = vmatpush1.msra.mxu0 0.0
  %380 = vmatprep.subr.mxu0 0.0
  %381 = vmatpush1.msra.mxu0 0.0
  %v382 = vsub.f32 %v137, %v137
  %383 = vmatprep.subr.mxu0 %v382
  %v384 = vsub.f32 %v136, %v136
  %385 = vmatpush1.msra.mxu0 %v384
  %v386 = vsub.f32 %v135, %v135
  %387 = vmatprep.subr.mxu0 %v386
  %v388 = vsub.f32 %v134, %v134
  %389 = vmatpush1.msra.mxu0 %v388
  %v390 = vsub.f32 %v133, %v133
  %391 = vmatprep.subr.mxu0 %v390
  %v392 = vsub.f32 %v132, %v132
  %393 = vmatpush1.msra.mxu0 %v392
  %v394 = vsub.f32 %v131, %v131
  %395 = vmatprep.subr.mxu0 %v394
  %v396 = vsub.f32 %v130, %v130
  %397 = vmatpush1.msra.mxu0 %v396
  %v398 = vsub.f32 %v129, %v129
  %399 = vmatprep.subr.mxu0 %v398
  %v400 = vsub.f32 %v128, %v128
  %401 = vmatpush1.msra.mxu0 %v400
  %v402 = vsub.f32 %v127, %v127
  %403 = vmatprep.subr.mxu0 %v402
  %v404 = vsub.f32 %v126, %v126
  %405 = vmatpush1.msra.mxu0 %v404
  %v406 = vsub.f32 %v125, %v125
  %407 = vmatprep.subr.mxu0 %v406
  %v408 = vsub.f32 %v124, %v124
  %409 = vmatpush1.msra.mxu0 %v408
  %v410 = vsub.f32 %v123, %v123
  %411 = vmatprep.subr.mxu0 %v410
  %v412 = vsub.f32 %v122, %v122
  %413 = vmatpush1.msra.mxu0 %v412
  %v414 = vsub.f32 %v121, %v121
  %415 = vmatprep.subr.mxu0 %v414
  %v416 = vsub.f32 %v120, %v120
  %417 = vmatpush1.msra.mxu0 %v416
  %v418 = vsub.f32 %v119, %v119
  %419 = vmatprep.subr.mxu0 %v418
  %v420 = vsub.f32 %v118, %v118
  %421 = vmatpush1.msra.mxu0 %v420
  %422 = vmatprep.subr.mxu0 0.0
  %423 = vmatpush2.msra.mxu0 0.0
  %424 = vmatprep.subr.mxu0 0.0
  %425 = vmatpush2.msra.mxu0 0.0
  %426 = vmatprep.subr.mxu0 0.0
  %427 = vmatpush2.msra.mxu0 0.0
  %428 = vmatprep.subr.mxu0 0.0
  %429 = vmatpush2.msra.mxu0 0.0
  %430 = vmatprep.subr.mxu0 0.0
  %431 = vmatpush2.msra.mxu0 0.0
  %432 = vmatprep.subr.mxu0 0.0
  %433 = vmatpush2.msra.mxu0 0.0
  %434 = vmatprep.subr.mxu0 0.0
  %435 = vmatpush2.msra.mxu0 0.0
  %436 = vmatprep.subr.mxu0 0.0
  %437 = vmatpush2.msra.mxu0 0.0
  %438 = vmatprep.subr.mxu0 0.0
  %439 = vmatpush2.msra.mxu0 0.0
  %440 = vmatprep.subr.mxu0 0.0
  %441 = vmatpush2.msra.mxu0 0.0
  %442 = vmatprep.subr.mxu0 0.0
  %443 = vmatpush2.msra.mxu0 0.0
  %444 = vmatprep.subr.mxu0 0.0
  %445 = vmatpush2.msra.mxu0 0.0
  %446 = vmatprep.subr.mxu0 0.0
  %447 = vmatpush2.msra.mxu0 0.0
  %448 = vmatprep.subr.mxu0 0.0
  %449 = vmatpush2.msra.mxu0 0.0
  %450 = vmatprep.subr.mxu0 0.0
  %451 = vmatpush2.msra.mxu0 0.0
  %452 = vmatprep.subr.mxu0 0.0
  %453 = vmatpush2.msra.mxu0 0.0
  %454 = vmatprep.mubr.f32.mxu0 0.0
  %v455 = vand.u32 %v140, 4294901760
  %v456 = vsub.f32 %v140, %v455
  %457 = vmatmul.mubr.f32.gmra.mxu0 %v456
  %v458 = vpop.f32.mrf.mxu0
  %v459 = vadd.f32 %v366, %v458
  %v460 = vpop.f32.mrf.mxu0
  %v461 = vadd.f32 %v368, %v460
  %462 = vdwg.mxu0
  %463 = vmatprep.subr.mxu0 0.0
  %464 = vmatpush1.msra.mxu0 0.0
  %465 = vmatprep.subr.mxu0 0.0
  %466 = vmatpush1.msra.mxu0 0.0
  %467 = vmatprep.subr.mxu0 0.0
  %468 = vmatpush1.msra.mxu0 0.0
  %469 = vmatprep.subr.mxu0 0.0
  %470 = vmatpush1.msra.mxu0 0.0
  %471 = vmatprep.subr.mxu0 0.0
  %472 = vmatpush1.msra.mxu0 0.0
  %473 = vmatprep.subr.mxu0 0.0
  %474 = vmatpush1.msra.mxu0 0.0
  %475 = vmatprep.subr.mxu0 %v137
  %476 = vmatpush1.msra.mxu0 %v136
  %477 = vmatprep.subr.mxu0 %v135
  %478 = vmatpush1.msra.mxu0 %v134
  %479 = vmatprep.subr.mxu0 %v133
  %480 = vmatpush1.msra.mxu0 %v132
  %481 = vmatprep.subr.mxu0 %v131
  %482 = vmatpush1.msra.mxu0 %v130
  %483 = vmatprep.subr.mxu0 %v129
  %484 = vmatpush1.msra.mxu0 %v128
  %485 = vmatprep.subr.mxu0 %v127
  %486 = vmatpush1.msra.mxu0 %v126
  %487 = vmatprep.subr.mxu0 %v125
  %488 = vmatpush1.msra.mxu0 %v124
  %489 = vmatprep.subr.mxu0 %v123
  %490 = vmatpush1.msra.mxu0 %v122
  %491 = vmatprep.subr.mxu0 %v121
  %492 = vmatpush1.msra.mxu0 %v120
  %493 = vmatprep.subr.mxu0 %v119
  %494 = vmatpush1.msra.mxu0 %v118
  %495 = vmatprep.subr.mxu0 0.0
  %496 = vmatpush2.msra.mxu0 0.0
  %497 = vmatprep.subr.mxu0 0.0
  %498 = vmatpush2.msra.mxu0 0.0
  %499 = vmatprep.subr.mxu0 0.0
  %500 = vmatpush2.msra.mxu0 0.0
  %501 = vmatprep.subr.mxu0 0.0
  %502 = vmatpush2.msra.mxu0 0.0
  %503 = vmatprep.subr.mxu0 0.0
  %504 = vmatpush2.msra.mxu0 0.0
  %505 = vmatprep.subr.mxu0 0.0
  %506 = vmatpush2.msra.mxu0 0.0
  %507 = vmatprep.subr.mxu0 0.0
  %508 = vmatpush2.msra.mxu0 0.0
  %509 = vmatprep.subr.mxu0 0.0
  %510 = vmatpush2.msra.mxu0 0.0
  %511 = vmatprep.subr.mxu0 0.0
  %512 = vmatpush2.msra.mxu0 0.0
  %513 = vmatprep.subr.mxu0 0.0
  %514 = vmatpush2.msra.mxu0 0.0
  %515 = vmatprep.subr.mxu0 0.0
  %516 = vmatpush2.msra.mxu0 0.0
  %517 = vmatprep.subr.mxu0 0.0
  %518 = vmatpush2.msra.mxu0 0.0
  %519 = vmatprep.subr.mxu0 0.0
  %520 = vmatpush2.msra.mxu0 0.0
  %521 = vmatprep.subr.mxu0 0.0
  %522 = vmatpush2.msra.mxu0 0.0
  %523 = vmatprep.subr.mxu0 0.0
  %524 = vmatpush2.msra.mxu0 0.0
  %525 = vmatprep.subr.mxu0 0.0
  %526 = vmatpush2.msra.mxu0 0.0
  %527 = vmatprep.mubr.f32.mxu0 0.0
  %v528 = vand.u32 %v140, 4294901760
  %v529 = vsub.f32 %v140, %v528
  %v530 = vand.u32 %v529, 4294901760
  %531 = vmatmul.mubr.f32.gmra.mxu0 %v530
  %v532 = vpop.f32.mrf.mxu0
  %v533 = vadd.f32 %v459, %v532
  %v534 = vpop.f32.mrf.mxu0
  %v535 = vadd.f32 %v461, %v534
  %536 = vdwg.mxu0
  %537 = vmatprep.subr.mxu0 0.0
  %538 = vmatpush1.msra.mxu0 0.0
  %539 = vmatprep.subr.mxu0 0.0
  %540 = vmatpush1.msra.mxu0 0.0
  %541 = vmatprep.subr.mxu0 0.0
  %542 = vmatpush1.msra.mxu0 0.0
  %543 = vmatprep.subr.mxu0 0.0
  %544 = vmatpush1.msra.mxu0 0.0
  %545 = vmatprep.subr.mxu0 0.0
  %546 = vmatpush1.msra.mxu0 0.0
  %547 = vmatprep.subr.mxu0 0.0
  %548 = vmatpush1.msra.mxu0 0.0
  %v549 = vsub.f32 %v137, %v137
  %v550 = vand.u32 %v549, 4294901760
  %551 = vmatprep.subr.mxu0 %v550
  %v552 = vsub.f32 %v136, %v136
  %v553 = vand.u32 %v552, 4294901760
  %554 = vmatpush1.msra.mxu0 %v553
  %v555 = vsub.f32 %v135, %v135
  %v556 = vand.u32 %v555, 4294901760
  %557 = vmatprep.subr.mxu0 %v556
  %v558 = vsub.f32 %v134, %v134
  %v559 = vand.u32 %v558, 4294901760
  %560 = vmatpush1.msra.mxu0 %v559
  %v561 = vsub.f32 %v133, %v133
  %v562 = vand.u32 %v561, 4294901760
  %563 = vmatprep.subr.mxu0 %v562
  %v564 = vsub.f32 %v132, %v132
  %v565 = vand.u32 %v564, 4294901760
  %566 = vmatpush1.msra.mxu0 %v565
  %v567 = vsub.f32 %v131, %v131
  %v568 = vand.u32 %v567, 4294901760
  %569 = vmatprep.subr.mxu0 %v568
  %v570 = vsub.f32 %v130, %v130
  %v571 = vand.u32 %v570, 4294901760
  %572 = vmatpush1.msra.mxu0 %v571
  %v573 = vsub.f32 %v129, %v129
  %v574 = vand.u32 %v573, 4294901760
  %575 = vmatprep.subr.mxu0 %v574
  %v576 = vsub.f32 %v128, %v128
  %v577 = vand.u32 %v576, 4294901760
  %578 = vmatpush1.msra.mxu0 %v577
  %v579 = vsub.f32 %v127, %v127
  %v580 = vand.u32 %v579, 4294901760
  %581 = vmatprep.subr.mxu0 %v580
  %v582 = vsub.f32 %v126, %v126
  %v583 = vand.u32 %v582, 4294901760
  %584 = vmatpush1.msra.mxu0 %v583
  %v585 = vsub.f32 %v125, %v125
  %v586 = vand.u32 %v585, 4294901760
  %587 = vmatprep.subr.mxu0 %v586
  %v588 = vsub.f32 %v124, %v124
  %v589 = vand.u32 %v588, 4294901760
  %590 = vmatpush1.msra.mxu0 %v589
  %v591 = vsub.f32 %v123, %v123
  %v592 = vand.u32 %v591, 4294901760
  %593 = vmatprep.subr.mxu0 %v592
  %v594 = vsub.f32 %v122, %v122
  %v595 = vand.u32 %v594, 4294901760
  %596 = vmatpush1.msra.mxu0 %v595
  %v597 = vsub.f32 %v121, %v121
  %v598 = vand.u32 %v597, 4294901760
  %599 = vmatprep.subr.mxu0 %v598
  %v600 = vsub.f32 %v120, %v120
  %v601 = vand.u32 %v600, 4294901760
  %602 = vmatpush1.msra.mxu0 %v601
  %v603 = vsub.f32 %v119, %v119
  %v604 = vand.u32 %v603, 4294901760
  %605 = vmatprep.subr.mxu0 %v604
  %v606 = vsub.f32 %v118, %v118
  %v607 = vand.u32 %v606, 4294901760
  %608 = vmatpush1.msra.mxu0 %v607
  %609 = vmatprep.subr.mxu0 0.0
  %610 = vmatpush2.msra.mxu0 0.0
  %611 = vmatprep.subr.mxu0 0.0
  %612 = vmatpush2.msra.mxu0 0.0
  %613 = vmatprep.subr.mxu0 0.0
  %614 = vmatpush2.msra.mxu0 0.0
  %615 = vmatprep.subr.mxu0 0.0
  %616 = vmatpush2.msra.mxu0 0.0
  %617 = vmatprep.subr.mxu0 0.0
  %618 = vmatpush2.msra.mxu0 0.0
  %619 = vmatprep.subr.mxu0 0.0
  %620 = vmatpush2.msra.mxu0 0.0
  %621 = vmatprep.subr.mxu0 0.0
  %622 = vmatpush2.msra.mxu0 0.0
  %623 = vmatprep.subr.mxu0 0.0
  %624 = vmatpush2.msra.mxu0 0.0
  %625 = vmatprep.subr.mxu0 0.0
  %626 = vmatpush2.msra.mxu0 0.0
  %627 = vmatprep.subr.mxu0 0.0
  %628 = vmatpush2.msra.mxu0 0.0
  %629 = vmatprep.subr.mxu0 0.0
  %630 = vmatpush2.msra.mxu0 0.0
  %631 = vmatprep.subr.mxu0 0.0
  %632 = vmatpush2.msra.mxu0 0.0
  %633 = vmatprep.subr.mxu0 0.0
  %634 = vmatpush2.msra.mxu0 0.0
  %635 = vmatprep.subr.mxu0 0.0
  %636 = vmatpush2.msra.mxu0 0.0
  %637 = vmatprep.subr.mxu0 0.0
  %638 = vmatpush2.msra.mxu0 0.0
  %639 = vmatprep.subr.mxu0 0.0
  %640 = vmatpush2.msra.mxu0 0.0
  %641 = vmatprep.mubr.f32.mxu0 0.0
  %v642 = vand.u32 %v140, 4294901760
  %643 = vmatmul.mubr.f32.gmra.mxu0 %v642
  %v644 = vpop.f32.mrf.mxu0
  %v645 = vadd.f32 %v533, %v644
  %v646 = vpop.f32.mrf.mxu0
  %v647 = vadd.f32 %v535, %v646
  %648 = vdwg.mxu0
  %649 = vmatprep.subr.mxu0 0.0
  %650 = vmatpush1.msra.mxu0 0.0
  %651 = vmatprep.subr.mxu0 0.0
  %652 = vmatpush1.msra.mxu0 0.0
  %653 = vmatprep.subr.mxu0 0.0
  %654 = vmatpush1.msra.mxu0 0.0
  %655 = vmatprep.subr.mxu0 0.0
  %656 = vmatpush1.msra.mxu0 0.0
  %657 = vmatprep.subr.mxu0 0.0
  %658 = vmatpush1.msra.mxu0 0.0
  %659 = vmatprep.subr.mxu0 0.0
  %660 = vmatpush1.msra.mxu0 0.0
  %661 = vmatprep.subr.mxu0 %v137
  %662 = vmatpush1.msra.mxu0 %v136
  %663 = vmatprep.subr.mxu0 %v135
  %664 = vmatpush1.msra.mxu0 %v134
  %665 = vmatprep.subr.mxu0 %v133
  %666 = vmatpush1.msra.mxu0 %v132
  %667 = vmatprep.subr.mxu0 %v131
  %668 = vmatpush1.msra.mxu0 %v130
  %669 = vmatprep.subr.mxu0 %v129
  %670 = vmatpush1.msra.mxu0 %v128
  %671 = vmatprep.subr.mxu0 %v127
  %672 = vmatpush1.msra.mxu0 %v126
  %673 = vmatprep.subr.mxu0 %v125
  %674 = vmatpush1.msra.mxu0 %v124
  %675 = vmatprep.subr.mxu0 %v123
  %676 = vmatpush1.msra.mxu0 %v122
  %677 = vmatprep.subr.mxu0 %v121
  %678 = vmatpush1.msra.mxu0 %v120
  %679 = vmatprep.subr.mxu0 %v119
  %680 = vmatpush1.msra.mxu0 %v118
  %681 = vmatprep.subr.mxu0 0.0
  %682 = vmatpush2.msra.mxu0 0.0
  %683 = vmatprep.subr.mxu0 0.0
  %684 = vmatpush2.msra.mxu0 0.0
  %685 = vmatprep.subr.mxu0 0.0
  %686 = vmatpush2.msra.mxu0 0.0
  %687 = vmatprep.subr.mxu0 0.0
  %688 = vmatpush2.msra.mxu0 0.0
  %689 = vmatprep.subr.mxu0 0.0
  %690 = vmatpush2.msra.mxu0 0.0
  %691 = vmatprep.subr.mxu0 0.0
  %692 = vmatpush2.msra.mxu0 0.0
  %693 = vmatprep.subr.mxu0 0.0
  %694 = vmatpush2.msra.mxu0 0.0
  %695 = vmatprep.subr.mxu0 0.0
  %696 = vmatpush2.msra.mxu0 0.0
  %697 = vmatprep.subr.mxu0 0.0
  %698 = vmatpush2.msra.mxu0 0.0
  %699 = vmatprep.subr.mxu0 0.0
  %700 = vmatpush2.msra.mxu0 0.0
  %701 = vmatprep.subr.mxu0 0.0
  %702 = vmatpush2.msra.mxu0 0.0
  %703 = vmatprep.subr.mxu0 0.0
  %704 = vmatpush2.msra.mxu0 0.0
  %705 = vmatprep.subr.mxu0 0.0
  %706 = vmatpush2.msra.mxu0 0.0
  %707 = vmatprep.subr.mxu0 0.0
  %708 = vmatpush2.msra.mxu0 0.0
  %709 = vmatprep.subr.mxu0 0.0
  %710 = vmatpush2.msra.mxu0 0.0
  %711 = vmatprep.subr.mxu0 0.0
  %712 = vmatpush2.msra.mxu0 0.0
  %713 = vmatprep.mubr.f32.mxu0 0.0
  %v714 = vand.u32 %v140, 4294901760
  %715 = vmatmul.mubr.f32.gmra.mxu0 %v714
  %v716 = vpop.f32.mrf.mxu0
  %v717 = vadd.f32 %v645, %v716
  %v718 = vpop.f32.mrf.mxu0
  %v719 = vadd.f32 %v647, %v718
  %720 = vdwg.mxu0
  %v721 = vcvt.s32.f32 %v26
  %v722 = vcvt.s32.f32 %v27
  %v723 = vmul.f32 %v721, 0.33333334
  %v724 = vmul.f32 %v722, 0.33333334
  %v725 = vfloor.f32 %v723
  %v726 = vfloor.f32 %v724
  %v727 = vcvt.f32.s32.to.zero.pseudo %v725
  %v728 = vcvt.f32.s32.to.zero.pseudo %v726
  %v729 = vmul.u32 %v727, 3
  %v730 = vmul.u32 %v728, 3
  %v731 = vsub.s32 %v26, %v729
  %v732 = vsub.s32 %v27, %v730
  %vm733 = vcmp.eq.s32.totalorder %v731, %v15
  %vm734 = vcmp.eq.s32.totalorder %v732, %v15
  %v735 = vsel %vm733, 1.0, 0.0
  %v736 = vsel %vm734, 1.0, 0.0
  %v737 = vmul.f32 %v717, %v735
  %v738 = vmul.f32 %v719, %v736
  %vm739 = vcmask 1042432
  %v740 = vsel %vm739, %v737, 0.0
  %v741 = vrot.slane %v740, 4
  %v742 = vadd.f32 %v740, %v741
  %v743 = vrot.slane %v742, 2
  %v744 = vadd.f32 %v742, %v743
  %v745 = vrot.slane %v744, 1
  %v746 = vadd.f32 %v744, %v745
  %vm747 = vcmask 911360
  %v748 = vsel %vm747, %v738, 0.0
  %v749 = vrot.slane %v748, 4
  %v750 = vadd.f32 %v748, %v749
  %v751 = vrot.slane %v750, 2
  %v752 = vadd.f32 %v750, %v751
  %v753 = vrot.slane %v752, 1
  %v754 = vadd.f32 %v752, %v753
  %v757 = vcombine.low %v746, %v754
  %vm759 = vcmask 1043456
  %vm760 = vcmask 916484
  %vm761 = vmor %vm760, %vm759
  %762 = vst.msk [vmem:[%s1] sm:$0xff] %vm761, %v757
  // Predicated region
  $region6: #{model_forward.1} parent=0 // pred_check
    _
  $region7: #{model_forward.1} parent=0 // pred_check_branch
    %764 = sbr.rel (0) target = $region9
  $region8: #{model_forward.1} parent=0 // pred_region
    _
  $region9: #{model_forward.1} parent=0 // pred_fallthru
    _
  // Predicated region
  $region10: #{model_forward.1} parent=0 // pred_check
    _
  $region11: #{model_forward.1} parent=0 // pred_check_branch
    %766 = sbr.rel (0) target = $region13
  $region12: #{model_forward.1} parent=0 // pred_region
    _
  $region13: #{model_forward.1} parent=0 // pred_fallthru
    _

</llo_original>
